<compile_context>
chip_gen: v7x
topology: tpu7x:2x2x1
jax: 0.10.0
libtpu: 0.0.40
codegen_flags: <defaults>
</compile_context>

<pallas_src>
import jax
import jax.numpy as jnp
from jax.experimental import pallas as pl
from jax.experimental.pallas import tpu as pltpu

_MIB = 1024 * 1024


def _patch_merging_kernel(x_ref, w_ref, b_ref, o_ref):
    """LayerNorm(4C) + bias-free Linear(4C->2C); gamma/beta pre-folded into w/b.

    x_ref: (tile_m, 2, Wo, 2C)  h-parity 0/1 rows; channels = [w-even C | w-odd C]
    w_ref: (2, 2C, 2C)          gamma-folded reduction weight, split by h-parity
    b_ref: (1, 2C)              beta-folded bias (f32)
    o_ref: (tile_m * Wo, 2C)
    """
    tm, _, wo, c2 = x_ref.shape
    rows = tm * wo
    inv_c4 = 1.0 / (2.0 * c2)  # 1 / (4*C)

    # Parity slices of the single contiguous VMEM block (static views + load).
    # TODO(synk): the (tile_m, Wo) -> rows collapse is only a free view when
    # Wo % 8 == 0; for Wo = 28/14/7 it costs a relayout -- revisit with a
    # rank-3-lhs dot once Mosaic supports it, or tile at Wo boundaries.
    xt = x_ref[:, 0].reshape(rows, c2).astype(jnp.float32)
    xb = x_ref[:, 1].reshape(rows, c2).astype(jnp.float32)

    # One-pass LayerNorm statistics over the merged 4C channels (f32).
    # Note: E[x^2] - mean^2 can lose precision when |mean| >> std; variance is
    # clamped to >= 0 and validated against the two-pass reference below.
    s = jnp.sum(xt, axis=-1, keepdims=True) + jnp.sum(xb, axis=-1, keepdims=True)
    ss = jnp.sum(xt * xt, axis=-1, keepdims=True) + jnp.sum(
        xb * xb, axis=-1, keepdims=True
    )
    mean = s * inv_c4
    var = jnp.maximum(ss * inv_c4 - mean * mean, 0.0)
    inv = jax.lax.rsqrt(var + 1e-5)  # eps matches torch.nn.LayerNorm default

    # gamma/beta already folded into w_ref / b_ref: feed (x - mean) * inv
    # straight to the MXU (cast fused, no separate normalized f32 slab kept).
    wdt = w_ref.dtype
    acc = jnp.dot(((xt - mean) * inv).astype(wdt), w_ref[0],
                  preferred_element_type=jnp.float32)
    acc = acc + jnp.dot(((xb - mean) * inv).astype(wdt), w_ref[1],
                        preferred_element_type=jnp.float32)
    acc = acc + b_ref[...].astype(jnp.float32)
    o_ref[...] = acc.astype(o_ref.dtype)


def _tpu_vmem_capacity_bytes():
    """Physical VMEM per TensorCore; conservative 64 MiB fallback (v7x-sized)."""
    try:
        info = pltpu.get_tpu_info()
        for attr in ("vmem_capacity_bytes", "vmem_bytes", "vmem_size_bytes"):
            v = getattr(info, attr, None)
            if v:
                return int(v)
    except Exception:
        pass
    return 64 * _MIB


def _per_row_vmem_bytes(wo, c2, act_itemsize):
    """VMEM bytes per row of B*Ho inside one grid step: double-buffered I/O
    blocks + f32 LN temporaries + MXU operands + f32 accumulator."""
    b = 2 * (2 * wo * c2) * act_itemsize   # input block (tile_m, 2, Wo, 2C), x2 buffers
    b += 2 * (wo * c2) * act_itemsize      # output block, x2 buffers
    b += 2 * (wo * c2) * 4                 # f32 parity loads
    b += 2 * (wo * c2) * act_itemsize      # normalized MXU operands
    b += (wo * c2) * 4                     # f32 accumulator
    return b


def _pick_tile_m(m, wo, per_row, resident, budget_bytes, prefer_steps, prefer_even):
    """Largest divisor of B*Ho that fits the VMEM budget, keeps the flattened
    (tile_m*Wo, 2C) output block sublane-aligned, and (when possible) leaves
    enough grid steps for pipelining / TensorCore sharding."""
    cap = max(1, (budget_bytes - resident) // max(per_row, 1))
    divisors = [d for d in range(1, m + 1)
                if m % d == 0 and (d == m or (d * wo) % 8 == 0)]
    fits = [d for d in divisors if d <= cap]
    if not fits:
        return divisors[0]                 # smallest legal tile; budget is advisory
    best = fits[-1]
    for d in reversed(fits):               # largest tile with enough grid steps
        steps = m // d
        if steps >= prefer_steps and (not prefer_even or steps % 2 == 0):
            best = d
            break
    return best


def patch_merging_pallas(x, norm_weight, norm_bias, reduction_weight):
    """Swin PatchMerging forward.

    x: (B, H, W, C) with H, W even.
    norm_weight, norm_bias: (4C,)  (LayerNorm params in torch concat order)
    reduction_weight: (2C, 4C)     (torch nn.Linear convention, bias-free)
    Returns (B, H//2, W//2, 2C) in x.dtype.
    """
    B, H, W, C = x.shape
    assert H % 2 == 0 and W % 2 == 0, "PatchMerging needs even H and W"
    Ho, Wo = H // 2, W // 2
    M = B * Ho
    N = M * Wo
    C2, C4 = 2 * C, 4 * C
    itemsize = x.dtype.itemsize

    # Free view: (B*Ho, h-parity, Wo, [w-even C | w-odd C]).  One contiguous
    # HBM->VMEM DMA per grid step covers both h-parities; the 2x2 gather is
    # finished by cheap in-kernel parity slices.
    xr = x.reshape(M, 2, Wo, C2)

    # Re-order parameters from the torch 4C concat order
    #   [(h0,w0), (h1,w0), (h0,w1), (h1,w1)]  (chunks of C)
    # to the kernel order, split by h-parity hp: [(hp, w-even) C | (hp, w-odd) C].
    def to_kernel_order(p):
        trailing = p.shape[1:]
        perm = (1, 0, 2) + tuple(range(3, 3 + len(trailing)))
        return p.reshape((2, 2, C) + trailing).transpose(perm).reshape(
            (2, C2) + trailing
        )

    g32 = to_kernel_order(norm_weight).astype(jnp.float32)          # (2, 2C)
    bt32 = to_kernel_order(norm_bias).astype(jnp.float32)           # (2, 2C)
    w32 = to_kernel_order(reduction_weight.T).astype(jnp.float32)   # (2, 2C, 2C)

    # Fold LN gamma/beta into the reduction weight / bias (fold in f32, cast):
    #   y = ((x - mean) * inv) @ (gamma * W) + beta @ W
    w_fold = (g32[:, :, None] * w32).astype(x.dtype)                 # MXU operand dtype
    bias = (bt32[0] @ w32[0] + bt32[1] @ w32[1]).reshape(1, C2)      # f32
    # TODO(synk): for very large C (>= ~768) also tile w_fold over its output
    # dim (extra grid axis) so the resident weight stays small on 64 MiB v7x.

    # ---- hardware-aware tiling ------------------------------------------
    vmem_cap = _tpu_vmem_capacity_bytes()
    big_vmem = vmem_cap >= 96 * _MIB          # v5e / v6e: 128 MiB physical VMEM
    budget = (40 if big_vmem else 12) * _MIB
    limit_cap = min((96 if big_vmem else 44) * _MIB, vmem_cap - 16 * _MIB)
    # v7x-class chips (64 MiB, 2 TCs sharing the "parallel" axis): prefer an
    # even grid-step count >= 4 so each core runs >= 2 pipelined iterations.
    prefer_steps = 2 if big_vmem else 4
    prefer_even = not big_vmem

    per_row = _per_row_vmem_bytes(Wo, C2, itemsize)
    w_bytes = w_fold.size * w_fold.dtype.itemsize
    b_bytes = bias.size * bias.dtype.itemsize
    single_buffer_w = w_bytes >= 4 * _MIB     # only worth it when weight is big
    resident = (1 if single_buffer_w else 2) * (w_bytes + b_bytes)

    tile_m = _pick_tile_m(M, Wo, per_row, resident, budget, prefer_steps, prefer_even)
    rows = tile_m * Wo
    grid = (M // tile_m,)

    est = tile_m * per_row + resident
    vmem_limit = int(min(max(2 * est, 32 * _MIB), max(limit_cap, 32 * _MIB)))

    # Constant-index-map params: single-buffer the weight when large (frees
    # VMEM for the activation tile, which is what hides the HBM DMA).
    w_spec_kwargs = dict(pipeline_mode=pl.Buffered(1)) if single_buffer_w else {}
    w_spec = pl.BlockSpec((2, C2, C2), lambda i: (0, 0, 0), **w_spec_kwargs)
    b_spec = pl.BlockSpec((1, C2), lambda i: (0, 0))

    cost = pl.CostEstimate(
        flops=int(4 * N * C2 * C2 + 10 * N * C4),
        transcendentals=int(N),
        bytes_accessed=int(x.size * itemsize + N * C2 * itemsize
                           + w_bytes + b_bytes),
    )

    out = pl.pallas_call(
        _patch_merging_kernel,
        out_shape=jax.ShapeDtypeStruct((N, C2), x.dtype),
        grid=grid,
        in_specs=[
            pl.BlockSpec((tile_m, 2, Wo, C2), lambda i: (i, 0, 0, 0)),
            w_spec,
            b_spec,
        ],
        out_specs=pl.BlockSpec((rows, C2), lambda i: (i, 0)),
        compiler_params=pltpu.CompilerParams(
            dimension_semantics=("parallel",),
            vmem_limit_bytes=vmem_limit,
        ),
        cost_estimate=cost,
    )(xr, w_fold, bias)

    # (N, 2C) -> (B, Ho, Wo, 2C): splits the leading dim only -> free metadata.
    return out.reshape(B, Ho, Wo, C2)


def _reference(x, norm_weight, norm_bias, reduction_weight):
    x0 = x[:, 0::2, 0::2, :]
    x1 = x[:, 1::2, 0::2, :]
    x2 = x[:, 0::2, 1::2, :]
    x3 = x[:, 1::2, 1::2, :]
    xm = jnp.concatenate([x0, x1, x2, x3], axis=-1).astype(jnp.float32)
    mean = jnp.mean(xm, axis=-1, keepdims=True)
    var = jnp.mean((xm - mean) ** 2, axis=-1, keepdims=True)
    xn = (xm - mean) * jax.lax.rsqrt(var + 1e-5)
    xn = xn * norm_weight + norm_bias
    return jnp.einsum("bhwc,oc->bhwo", xn, reduction_weight)


if __name__ == "__main__":
    key = jax.random.PRNGKey(0)
    k_x, k_w, k_g, k_b = jax.random.split(key, 4)

    # Small shapes: batch=2, H=W=16, dim=32  ->  4*dim=128, 2*dim=64.
    B, H, W, dim = 2, 16, 16, 32
    x = jax.random.normal(k_x, (B, H, W, dim), dtype=jnp.float32)

    # Non-trivial LN params so the channel re-ordering / folding is exercised.
    norm_weight = 1.0 + 0.1 * jax.random.normal(k_g, (4 * dim,), dtype=jnp.float32)
    norm_bias = 0.05 * jax.random.normal(k_b, (4 * dim,), dtype=jnp.float32)
    reduction_weight = 0.05 * jax.random.normal(
        k_w, (2 * dim, 4 * dim), dtype=jnp.float32
    )  # nn.Linear(4*dim, 2*dim, bias=False)

    out = patch_merging_pallas(x, norm_weight, norm_bias, reduction_weight)
    out = jax.block_until_ready(out)

    ref = _reference(x, norm_weight, norm_bias, reduction_weight)
    assert out.shape == (B, H // 2, W // 2, 2 * dim), out.shape
    assert jnp.allclose(out, ref, atol=2e-4, rtol=2e-4), float(
        jnp.max(jnp.abs(out - ref))
    )

    print("KERNEL_OK")
</pallas_src>

<mosaic_0001>
module attributes {stable_mosaic.version = 11 : i64} {
  func.func @_patch_merging_kernel(%arg0: i32, %arg1: memref<4x2x8x64xf32, #tpu.memory_space<vmem>>, %arg2: memref<2x64x64xf32, #tpu.memory_space<vmem>>, %arg3: memref<1x64xf32, #tpu.memory_space<vmem>>, %arg4: memref<32x64xf32, #tpu.memory_space<vmem>>) attributes {dimension_semantics = [#tpu.dimension_semantics<parallel>], iteration_bounds = array<i64: 4>, scalar_prefetch = 0 : i64, scratch_operands = 0 : i64, tpu.core_type = #tpu.core_type<tc>, window_params = [{transform_indices = @transform_0, window_bounds = array<i64: 4, 2, 8, 64>}, {pipeline_mode = #tpu.pipeline_mode<synchronous>, transform_indices = @transform_1, window_bounds = array<i64: 2, 64, 64>}, {pipeline_mode = #tpu.pipeline_mode<synchronous>, transform_indices = @transform_2, window_bounds = array<i64: 1, 64>}, {transform_indices = @transform_3, window_bounds = array<i64: 32, 64>}]} {
    %c0 = arith.constant 0 : index
    %c0_0 = arith.constant 0 : index
    %c0_1 = arith.constant 0 : index
    %c0_2 = arith.constant 0 : index
    %0 = vector.load %arg1[%c0, %c0_0, %c0_1, %c0_2] : memref<4x2x8x64xf32, #tpu.memory_space<vmem>>, vector<4x1x8x64xf32>
    %1 = vector.shape_cast %0 : vector<4x1x8x64xf32> to vector<4x8x64xf32>
    %2 = vector.shape_cast %1 : vector<4x8x64xf32> to vector<32x64xf32>
    %c0_3 = arith.constant 0 : index
    %c1 = arith.constant 1 : index
    %c0_4 = arith.constant 0 : index
    %c0_5 = arith.constant 0 : index
    %3 = vector.load %arg1[%c0_3, %c1, %c0_4, %c0_5] : memref<4x2x8x64xf32, #tpu.memory_space<vmem>>, vector<4x1x8x64xf32>
    %4 = vector.shape_cast %3 : vector<4x1x8x64xf32> to vector<4x8x64xf32>
    %5 = vector.shape_cast %4 : vector<4x8x64xf32> to vector<32x64xf32>
    %cst = arith.constant dense<0.000000e+00> : vector<32xf32>
    %6 = vector.multi_reduction <add>, %2, %cst [1] : vector<32x64xf32> to vector<32xf32>
    %7 = vector.shape_cast %6 : vector<32xf32> to vector<32x1xf32>
    %cst_6 = arith.constant dense<0.000000e+00> : vector<32xf32>
    %8 = vector.multi_reduction <add>, %5, %cst_6 [1] : vector<32x64xf32> to vector<32xf32>
    %9 = vector.shape_cast %8 : vector<32xf32> to vector<32x1xf32>
    %10 = arith.addf %7, %9 : vector<32x1xf32>
    %11 = arith.mulf %2, %2 : vector<32x64xf32>
    %cst_7 = arith.constant dense<0.000000e+00> : vector<32xf32>
    %12 = vector.multi_reduction <add>, %11, %cst_7 [1] : vector<32x64xf32> to vector<32xf32>
    %13 = vector.shape_cast %12 : vector<32xf32> to vector<32x1xf32>
    %14 = arith.mulf %5, %5 : vector<32x64xf32>
    %cst_8 = arith.constant dense<0.000000e+00> : vector<32xf32>
    %15 = vector.multi_reduction <add>, %14, %cst_8 [1] : vector<32x64xf32> to vector<32xf32>
    %16 = vector.shape_cast %15 : vector<32xf32> to vector<32x1xf32>
    %17 = arith.addf %13, %16 : vector<32x1xf32>
    %cst_9 = arith.constant 7.812500e-03 : f32
    %18 = vector.broadcast %cst_9 : f32 to vector<32x1xf32>
    %19 = arith.mulf %10, %18 : vector<32x1xf32>
    %cst_10 = arith.constant 7.812500e-03 : f32
    %20 = vector.broadcast %cst_10 : f32 to vector<32x1xf32>
    %21 = arith.mulf %17, %20 : vector<32x1xf32>
    %22 = arith.mulf %19, %19 : vector<32x1xf32>
    %23 = arith.subf %21, %22 : vector<32x1xf32>
    %cst_11 = arith.constant 0.000000e+00 : f32
    %24 = vector.broadcast %cst_11 : f32 to vector<32x1xf32>
    %25 = arith.maximumf %23, %24 : vector<32x1xf32>
    %cst_12 = arith.constant 9.99999974E-6 : f32
    %26 = vector.broadcast %cst_12 : f32 to vector<32x1xf32>
    %27 = arith.addf %25, %26 : vector<32x1xf32>
    %28 = math.rsqrt %27 : vector<32x1xf32>
    %29 = vector.broadcast %19 : vector<32x1xf32> to vector<32x64xf32>
    %30 = arith.subf %2, %29 : vector<32x64xf32>
    %31 = vector.broadcast %28 : vector<32x1xf32> to vector<32x64xf32>
    %32 = arith.mulf %30, %31 : vector<32x64xf32>
    %c0_13 = arith.constant 0 : index
    %c0_14 = arith.constant 0 : index
    %c0_15 = arith.constant 0 : index
    %33 = vector.load %arg2[%c0_13, %c0_14, %c0_15] : memref<2x64x64xf32, #tpu.memory_space<vmem>>, vector<1x64x64xf32>
    %34 = vector.shape_cast %33 : vector<1x64x64xf32> to vector<64x64xf32>
    %cst_16 = arith.constant dense<0.000000e+00> : vector<32x64xf32>
    %35 = tpu.matmul %32, %34, %cst_16 {dimension_numbers = #tpu.dot_dimension_numbers<[1], [0], [0], [1], [0, 0, 1, 1], [], []>} : vector<32x64xf32>, vector<64x64xf32>, vector<32x64xf32> -> vector<32x64xf32>
    %36 = vector.broadcast %19 : vector<32x1xf32> to vector<32x64xf32>
    %37 = arith.subf %5, %36 : vector<32x64xf32>
    %38 = vector.broadcast %28 : vector<32x1xf32> to vector<32x64xf32>
    %39 = arith.mulf %37, %38 : vector<32x64xf32>
    %c1_17 = arith.constant 1 : index
    %c0_18 = arith.constant 0 : index
    %c0_19 = arith.constant 0 : index
    %40 = vector.load %arg2[%c1_17, %c0_18, %c0_19] : memref<2x64x64xf32, #tpu.memory_space<vmem>>, vector<1x64x64xf32>
    %41 = vector.shape_cast %40 : vector<1x64x64xf32> to vector<64x64xf32>
    %cst_20 = arith.constant dense<0.000000e+00> : vector<32x64xf32>
    %42 = tpu.matmul %39, %41, %cst_20 {dimension_numbers = #tpu.dot_dimension_numbers<[1], [0], [0], [1], [0, 0, 1, 1], [], []>} : vector<32x64xf32>, vector<64x64xf32>, vector<32x64xf32> -> vector<32x64xf32>
    %43 = arith.addf %35, %42 : vector<32x64xf32>
    %c0_21 = arith.constant 0 : index
    %c0_22 = arith.constant 0 : index
    %44 = vector.load %arg3[%c0_21, %c0_22] : memref<1x64xf32, #tpu.memory_space<vmem>>, vector<1x64xf32>
    %45 = vector.broadcast %44 : vector<1x64xf32> to vector<32x64xf32>
    %46 = arith.addf %43, %45 : vector<32x64xf32>
    %c0_23 = arith.constant 0 : index
    %c0_24 = arith.constant 0 : index
    %47 = vector.load %arg4[%c0_23, %c0_24] : memref<32x64xf32, #tpu.memory_space<vmem>>, vector<32x64xf32>
    tpu.vector_store %arg4[%c0_23, %c0_24], %46 {strides = array<i32>} : memref<32x64xf32, #tpu.memory_space<vmem>>, vector<32x64xf32>,
    return
  }
  func.func @transform_0(%arg0: i32) -> (i32, i32, i32, i32) {
    %c0_i32 = arith.constant 0 : i32
    %c0_i32_0 = arith.constant 0 : i32
    %c0_i32_1 = arith.constant 0 : i32
    %c0_i32_2 = arith.constant 0 : i32
    return %arg0, %c0_i32, %c0_i32_0, %c0_i32_1 : i32, i32, i32, i32
  }
  func.func @transform_1(%arg0: i32) -> (i32, i32, i32) {
    %c0_i32 = arith.constant 0 : i32
    %c0_i32_0 = arith.constant 0 : i32
    %c0_i32_1 = arith.constant 0 : i32
    %c0_i32_2 = arith.constant 0 : i32
    return %c0_i32, %c0_i32_0, %c0_i32_1 : i32, i32, i32
  }
  func.func @transform_2(%arg0: i32) -> (i32, i32) {
    %c0_i32 = arith.constant 0 : i32
    %c0_i32_0 = arith.constant 0 : i32
    %c0_i32_1 = arith.constant 0 : i32
    return %c0_i32, %c0_i32_0 : i32, i32
  }
  func.func @transform_3(%arg0: i32) -> (i32, i32) {
    %c0_i32 = arith.constant 0 : i32
    %c0_i32_0 = arith.constant 0 : i32
    return %arg0, %c0_i32 : i32, i32
  }
}

</mosaic_0001>

<llo_original>
// kernel: tpu_custom_call.1
$region0: #{tpu_custom_call.1}
  #allocation0 [shape = 'u32[]', space=smem, size = 0x4, offset = 0x4, fixed_abs, tag = 'smem constant byte address 0x4 - core index']
  #allocation1 [shape = 'u32[144,128]{1,0:T(1,128)}', space=vmem, size = 0x12000, scoped, tag = 'internal scratch']
  %s0 = inlined_call_operand.hbm [shape: f32[16,2,8,64], index: 0, kind: input, shape index: {}]
  %s1 = inlined_call_operand.hbm [shape: f32[2,64,64], index: 1, kind: input, shape index: {}]
  %s2 = inlined_call_operand.vmem [shape: f32[1,64], index: 2, kind: input, shape index: {}]
  %s3 = inlined_call_operand.vmem [shape: f32[128,64], index: 3, kind: output, shape index: {}]
  %s4 = sld [smem:[#allocation0]]
  $region53: #{tpu_custom_call.1} parent=0
    _
  %s6 = ssub.s32 1, %s4
  %s7 = scalar_select 0, %s6, %s4
  $region1: #{tpu_custom_call.1} parent=0
    #allocation2 [shape = 'u8[65536]{0}', space=vmem, size = 0x10000, scoped, tag = 'input window, operand 0']
    #allocation3 [shape = 's32[2]{0}', space=sflag, size = 0x8, scoped, tag = 'scoped memory for tpu_custom_call.1']
    #allocation4 [shape = 'u8[65536]{0}', space=vmem, size = 0x10000, scoped, tag = 'input window, operand 1, single buffered']
    #allocation5 [shape = 's32[1]{0}', space=sflag, size = 0x4, scoped, tag = 'scoped memory for tpu_custom_call.1']
    %8 = vsyncpa [#allocation3], 0
    %s9 = scalar_lea.sflag [#allocation3], 1
    %10 = vsyncpa %s9, 0
    %11 = vsyncpa [#allocation5], 0
    loop: start=0, step=1, limit=6
    $region2: #{tpu_custom_call.1} parent=1 // loop_pre_header
      _
    $region3: #{tpu_custom_call.1} parent=1 // loop_header
      %s13 = sphi 0, %s17
      %p14 = scmp.ge.s32.totalorder %s13, 6
      %s23 = sphi 0, %s25
      %s26 = sphi 0, %s23
      %s27 = sphi 0, %s26
      %s43 = sphi 0, %s27
      %s47 = sphi 0, %s47
      %s49 = sphi 0, %s47
      %s50 = sphi 0, %s49
      %s64 = sphi 0, %s50
      %s68 = sphi 0, %s68
      %s70 = sphi 0, %s68
      %s71 = sphi 0, %s70
      %s85 = sphi 0, %s71
      %s91 = sphi 0, %s93
      %s94 = sphi 0, %s91
      %s95 = sphi 0, %s94
      %s111 = sphi 0, %s95
    $region4: #{tpu_custom_call.1} parent=1 // loop_header_branch
      %16 = sbr.rel (%p14) target = $region8
    $region5: #{tpu_custom_call.1} parent=1 // loop_body
      %s18 = ssub.s32 %s13, 1
      %s19 = ssub.s32 %s13, 2
      %s20 = sadd.s32 %s13, 1
      %s21 = ssub.s32 %s13, %s20
      %p22 = scmp.eq.s32.totalorder %s21, 0
      %s24 = sadd.s32 %s23, 1
      %s25 = scalar_select %p22, %s23, %s24
      %p28 = pneg %p22
      %p29 = scmp.eq.s32.totalorder %s13, 3
      %p30 = por %p28, %p29
      %p31 = scmp.ne.s32.totalorder %s23, %s26
      %p32 = scmp.eq.s32.totalorder %s13, 0
      %p33 = por %p31, %p32
      %p34 = scmp.ne.s32.totalorder %s23, %s26
      %p35 = scmp.eq.s32.totalorder %s18, 3
      %p36 = por %p34, %p35
      %p37 = scmp.ne.s32.totalorder %s26, %s27
      %p38 = scmp.eq.s32.totalorder %s18, 0
      %p39 = por %p37, %p38
      %p40 = scmp.ne.s32.totalorder %s26, %s27
      %p41 = scmp.eq.s32.totalorder %s19, 3
      %p42 = por %p40, %p41
      %p44 = scmp.ne.s32.totalorder %s27, %s43
      %p45 = scmp.eq.s32.totalorder %s19, 0
      %p46 = por %p44, %p45
      %s48 = sadd.s32 %s47, 1
      %p51 = scmp.eq.s32.totalorder %s13, 3
      %p52 = scmp.ne.s32.totalorder %s47, %s49
      %p53 = scmp.eq.s32.totalorder %s13, 0
      %p54 = por %p52, %p53
      %p55 = scmp.ne.s32.totalorder %s47, %s49
      %p56 = scmp.eq.s32.totalorder %s18, 3
      %p57 = por %p55, %p56
      %p58 = scmp.ne.s32.totalorder %s49, %s50
      %p59 = scmp.eq.s32.totalorder %s18, 0
      %p60 = por %p58, %p59
      %p61 = scmp.ne.s32.totalorder %s49, %s50
      %p62 = scmp.eq.s32.totalorder %s19, 3
      %p63 = por %p61, %p62
      %p65 = scmp.ne.s32.totalorder %s50, %s64
      %p66 = scmp.eq.s32.totalorder %s19, 0
      %p67 = por %p65, %p66
      %s69 = sadd.s32 %s68, 1
      %p72 = scmp.eq.s32.totalorder %s13, 3
      %p73 = scmp.ne.s32.totalorder %s68, %s70
      %p74 = scmp.eq.s32.totalorder %s13, 0
      %p75 = por %p73, %p74
      %p76 = scmp.ne.s32.totalorder %s68, %s70
      %p77 = scmp.eq.s32.totalorder %s18, 3
      %p78 = por %p76, %p77
      %p79 = scmp.ne.s32.totalorder %s70, %s71
      %p80 = scmp.eq.s32.totalorder %s18, 0
      %p81 = por %p79, %p80
      %p82 = scmp.ne.s32.totalorder %s70, %s71
      %p83 = scmp.eq.s32.totalorder %s19, 3
      %p84 = por %p82, %p83
      %p86 = scmp.ne.s32.totalorder %s71, %s85
      %p87 = scmp.eq.s32.totalorder %s19, 0
      %p88 = por %p86, %p87
      %s89 = ssub.s32 %s13, %s20
      %p90 = scmp.eq.s32.totalorder %s89, 0
      %s92 = sadd.s32 %s91, 1
      %s93 = scalar_select %p90, %s91, %s92
      %p96 = pneg %p90
      %p97 = scmp.eq.s32.totalorder %s13, 3
      %p98 = por %p96, %p97
      %p99 = scmp.ne.s32.totalorder %s91, %s94
      %p100 = scmp.eq.s32.totalorder %s13, 0
      %p101 = por %p99, %p100
      %p102 = scmp.ne.s32.totalorder %s91, %s94
      %p103 = scmp.eq.s32.totalorder %s18, 3
      %p104 = por %p102, %p103
      %p105 = scmp.ne.s32.totalorder %s94, %s95
      %p106 = scmp.eq.s32.totalorder %s18, 0
      %p107 = por %p105, %p106
      %p108 = scmp.ne.s32.totalorder %s94, %s95
      %p109 = scmp.eq.s32.totalorder %s19, 3
      %p110 = por %p108, %p109
      %p112 = scmp.ne.s32.totalorder %s95, %s111
      %p113 = scmp.eq.s32.totalorder %s19, 0
      %p114 = por %p112, %p113
      %p115 = scmp.le.s32.totalorder 1, %s13
      %p116 = scmp.lt.s32.totalorder %s13, 5
      %p117 = pnand %p115, %p116
      %p118 = pneg %p117
      // Predicated region
      $region9: #{tpu_custom_call.1} parent=5 // pred_check
        _
      $region10: #{tpu_custom_call.1} parent=5 // pred_check_branch
        %120 = sbr.rel (%p117) target = $region12
      $region11: #{tpu_custom_call.1} parent=5 // pred_region
        %s121 = ssub.s32 %s13, 1
        // Predicated region
        $region13: #{tpu_custom_call.1} parent=11 // pred_check
          %p122 = pneg %p60
        $region14: #{tpu_custom_call.1} parent=11 // pred_check_branch
          %124 = sbr.rel (%p122) target = $region16
        $region15: #{tpu_custom_call.1} parent=11 // pred_region
          %s126 = ssub.s32 2048, 2048
          %127 = vsyncadd [#allocation5], %s126
          %s128 = sshll.u32 [#allocation4], 4
          %s129 = int_to_ptr.vmem [resolvable:$true] %s128
          %134 = dma.hbm_to_vmem [thread:$0]  %s1, 2048, %s129, [#allocation5], 128, 128, 8
        $region16: #{tpu_custom_call.1} parent=11 // pred_fallthru
          _
        // Predicated region
        $region17: #{tpu_custom_call.1} parent=11 // pred_check
          %p135 = pneg %p81
        $region18: #{tpu_custom_call.1} parent=11 // pred_check_branch
          %137 = sbr.rel (%p135) target = $region20
        $region19: #{tpu_custom_call.1} parent=11 // pred_region
          _
        $region20: #{tpu_custom_call.1} parent=11 // pred_fallthru
          _
      $region12: #{tpu_custom_call.1} parent=5 // pred_fallthru
        _
      %p138 = scmp.lt.s32.totalorder %s13, 4
      // Predicated region
      $region21: #{tpu_custom_call.1} parent=5 // pred_check
        %p139 = pneg %p138
      $region22: #{tpu_custom_call.1} parent=5 // pred_check_branch
        %141 = sbr.rel (%p139) target = $region24
      $region23: #{tpu_custom_call.1} parent=5 // pred_region
        // Predicated region
        $region25: #{tpu_custom_call.1} parent=23 // pred_check
          %p142 = pneg %p33
        $region26: #{tpu_custom_call.1} parent=23 // pred_check_branch
          %144 = sbr.rel (%p142) target = $region28
        $region27: #{tpu_custom_call.1} parent=23 // pred_region
          %s145 = sand.u32 %s23, 1
          %s146 = scalar_lea.sflag [#allocation3], %s145
          %s147 = sand.u32 %s23, 1
          %s148 = smul.addr %s147, 64
          %s149 = scalar_lea.vmem [#allocation2], %s148
          %s150 = smul.u32 4, %s13
          %s152 = ssub.s32 1024, 1024
          %153 = vsyncadd %s146, %s152
          %s154 = smul.addr %s150, 2
          %s155 = smul.addr %s154, 128
          %s156 = scalar_lea.hbm %s0, %s155
          %s157 = sshll.u32 %s149, 4
          %s158 = int_to_ptr.vmem [resolvable:$true] %s157
          %163 = dma.hbm_to_vmem [thread:$0]  %s156, 1024, %s158, %s146, 128, 128, 8
        $region28: #{tpu_custom_call.1} parent=23 // pred_fallthru
          _
      $region24: #{tpu_custom_call.1} parent=5 // pred_fallthru
        _
      %p164 = scmp.le.s32.totalorder 1, %s13
      %p165 = scmp.lt.s32.totalorder %s13, 5
      %p166 = pnand %p164, %p165
      %p167 = pneg %p166
      // Predicated region
      $region29: #{tpu_custom_call.1} parent=5 // pred_check
        _
      $region30: #{tpu_custom_call.1} parent=5 // pred_check_branch
        %169 = sbr.rel (%p166) target = $region32
      $region31: #{tpu_custom_call.1} parent=5 // pred_region
        %s170 = ssub.s32 %s13, 1
        %s171 = sand.u32 %s26, 1
        %s172 = scalar_lea.sflag [#allocation3], %s171
        %s173 = sand.u32 %s26, 1
        %s174 = smul.addr %s173, 64
        %s175 = scalar_lea.vmem [#allocation2], %s174
        // Predicated region
        $region33: #{tpu_custom_call.1} parent=31 // pred_check
          %p176 = pneg %p39
        $region34: #{tpu_custom_call.1} parent=31 // pred_check_branch
          %178 = sbr.rel (%p176) target = $region36
        $region35: #{tpu_custom_call.1} parent=31 // pred_region
          %179 = dma.done %s172, 1024
        $region36: #{tpu_custom_call.1} parent=31 // pred_fallthru
          _
        // Predicated region
        $region37: #{tpu_custom_call.1} parent=31 // pred_check
          %p180 = pneg %p60
        $region38: #{tpu_custom_call.1} parent=31 // pred_check_branch
          %182 = sbr.rel (%p180) target = $region40
        $region39: #{tpu_custom_call.1} parent=31 // pred_region
          %183 = dma.done [#allocation5], 2048
        $region40: #{tpu_custom_call.1} parent=31 // pred_fallthru
          _
        %s184 = sand.u32 %s26, 1
        %s185 = scalar_lea.sflag [#allocation3], %s184
        %s186 = sand.u32 %s26, 1
        %s187 = smul.addr %s186, 64
        %s188 = scalar_lea.vmem [#allocation2], %s187
        %p189 = pneg %p39
        %p190 = pneg %p36
        %p191 = pneg %p60
        %p192 = pneg %p57
        %p193 = pneg %p81
        %p194 = pneg %p78
        %p195 = pneg %p107
        %p196 = pneg %p104
        %s197 = smul.u32 4, %s18
        %p198 = scmp.lt.s32.totalorder %s197, 15
        %s199 = scalar_select %p198, %s197, 15
        %s200 = smul.addr %s199, 8
        %s201 = scalar_lea.vmem %s3, %s200
        %s202 = smul.u32 4, %s18
        %s203 = smul.u32 4, %s18
        %p204 = scmp.lt.s32.totalorder %s203, 15
        %s205 = scalar_select %p204, %s203, 15
        %s206 = smul.addr %s205, 8
        %s207 = scalar_lea.vmem %s3, %s206
        %s208 = smul.u32 4, %s18
        %v209 = vld [vmem:[%s175] sm:$0xff]
        %v210 = vld [vmem:[%s175 + $0x10] sm:$0xff]
        %v211 = vld [vmem:[%s175 + $0x20] sm:$0xff]
        %v212 = vld [vmem:[%s175 + $0x30] sm:$0xff]
        %s213 = scalar_lea.vmem %s175, 8 [#allocation2]
        %v214 = vld [vmem:[%s213] sm:$0xff]
        %v215 = vld [vmem:[%s213 + $0x10] sm:$0xff]
        %v216 = vld [vmem:[%s213 + $0x20] sm:$0xff]
        %v217 = vld [vmem:[%s213 + $0x30] sm:$0xff]
        %vm218 = vcmask 523264
        %v219 = vsel %vm218, %v209, 0.0
        %220 = vadd.xlane.f32.xlu0 %v219
        %v221 = vpop.xlane.xlu0 %220
        %v222 = vsel %vm218, %v210, 0.0
        %223 = vadd.xlane.f32.xlu0 %v222
        %v224 = vpop.xlane.xlu0 %223
        %v225 = vsel %vm218, %v211, 0.0
        %226 = vadd.xlane.f32.xlu0 %v225
        %v227 = vpop.xlane.xlu0 %226
        %v228 = vsel %vm218, %v212, 0.0
        %229 = vadd.xlane.f32.xlu0 %v228
        %v230 = vpop.xlane.xlu0 %229
        %v231 = vsel %vm218, %v214, 0.0
        %232 = vadd.xlane.f32.xlu0 %v231
        %v233 = vpop.xlane.xlu0 %232
        %v234 = vsel %vm218, %v215, 0.0
        %235 = vadd.xlane.f32.xlu0 %v234
        %v236 = vpop.xlane.xlu0 %235
        %v237 = vsel %vm218, %v216, 0.0
        %238 = vadd.xlane.f32.xlu0 %v237
        %v239 = vpop.xlane.xlu0 %238
        %v240 = vsel %vm218, %v217, 0.0
        %241 = vadd.xlane.f32.xlu0 %v240
        %v242 = vpop.xlane.xlu0 %241
        %v243 = vadd.f32 %v221, %v233
        %v244 = vadd.f32 %v224, %v236
        %v245 = vadd.f32 %v227, %v239
        %v246 = vadd.f32 %v230, %v242
        %v247 = vmul.f32 %v209, %v209
        %v248 = vmul.f32 %v210, %v210
        %v249 = vmul.f32 %v211, %v211
        %v250 = vmul.f32 %v212, %v212
        %v251 = vsel %vm218, %v247, 0.0
        %252 = vadd.xlane.f32.xlu0 %v251
        %v253 = vpop.xlane.xlu0 %252
        %v254 = vsel %vm218, %v248, 0.0
        %255 = vadd.xlane.f32.xlu0 %v254
        %v256 = vpop.xlane.xlu0 %255
        %v257 = vsel %vm218, %v249, 0.0
        %258 = vadd.xlane.f32.xlu0 %v257
        %v259 = vpop.xlane.xlu0 %258
        %v260 = vsel %vm218, %v250, 0.0
        %261 = vadd.xlane.f32.xlu0 %v260
        %v262 = vpop.xlane.xlu0 %261
        %v263 = vmul.f32 %v214, %v214
        %v264 = vmul.f32 %v215, %v215
        %v265 = vmul.f32 %v216, %v216
        %v266 = vmul.f32 %v217, %v217
        %v267 = vsel %vm218, %v263, 0.0
        %268 = vadd.xlane.f32.xlu0 %v267
        %v269 = vpop.xlane.xlu0 %268
        %v270 = vsel %vm218, %v264, 0.0
        %271 = vadd.xlane.f32.xlu0 %v270
        %v272 = vpop.xlane.xlu0 %271
        %v273 = vsel %vm218, %v265, 0.0
        %274 = vadd.xlane.f32.xlu0 %v273
        %v275 = vpop.xlane.xlu0 %274
        %v276 = vsel %vm218, %v266, 0.0
        %277 = vadd.xlane.f32.xlu0 %v276
        %v278 = vpop.xlane.xlu0 %277
        %v279 = vadd.f32 %v253, %v269
        %v280 = vadd.f32 %v256, %v272
        %v281 = vadd.f32 %v259, %v275
        %v282 = vadd.f32 %v262, %v278
        %v283 = vmul.f32 %v243, 0.0078125
        %v284 = vmul.f32 %v244, 0.0078125
        %v285 = vmul.f32 %v245, 0.0078125
        %v286 = vmul.f32 %v246, 0.0078125
        %v287 = vmul.f32 %v279, 0.0078125
        %v288 = vmul.f32 %v280, 0.0078125
        %v289 = vmul.f32 %v281, 0.0078125
        %v290 = vmul.f32 %v282, 0.0078125
        %v291 = vmul.f32 %v283, %v283
        %v292 = vmul.f32 %v284, %v284
        %v293 = vmul.f32 %v285, %v285
        %v294 = vmul.f32 %v286, %v286
        %v295 = vsub.f32 %v287, %v291
        %v296 = vsub.f32 %v288, %v292
        %v297 = vsub.f32 %v289, %v293
        %v298 = vsub.f32 %v290, %v294
        %v299 = vmax.f32 %v295, 0.0
        %v300 = vmax.f32 %v296, 0.0
        %v301 = vmax.f32 %v297, 0.0
        %v302 = vmax.f32 %v298, 0.0
        %v303 = vadd.f32 %v299, 1e-05
        %v304 = vadd.f32 %v300, 1e-05
        %v305 = vadd.f32 %v301, 1e-05
        %v306 = vadd.f32 %v302, 1e-05
        %v307 = vrsqrt.pop %v303
        %v308 = vrsqrt.pop %v304
        %v309 = vrsqrt.pop %v305
        %v310 = vrsqrt.pop %v306
        %v311 = vsub.f32 %v209, %v283
        %v312 = vsub.f32 %v210, %v284
        %v313 = vsub.f32 %v211, %v285
        %v314 = vsub.f32 %v212, %v286
        %v315 = vmul.f32 %v311, %v307
        %v316 = vmul.f32 %v312, %v308
        %v317 = vmul.f32 %v313, %v309
        %v318 = vmul.f32 %v314, %v310
        %v319 = vld [vmem:[#allocation4] sm:$0xff]
        %v320 = vld [vmem:[#allocation4 + $0x8] sm:$0xff]
        %v321 = vld [vmem:[#allocation4 + $0x10] sm:$0xff]
        %v322 = vld [vmem:[#allocation4 + $0x18] sm:$0xff]
        %v323 = vld [vmem:[#allocation4 + $0x20] sm:$0xff]
        %v324 = vld [vmem:[#allocation4 + $0x28] sm:$0xff]
        %v325 = vld [vmem:[#allocation4 + $0x30] sm:$0xff]
        %v326 = vld [vmem:[#allocation4 + $0x38] sm:$0xff]
        %v327 = vsub.f32 %v214, %v283
        %v328 = vsub.f32 %v215, %v284
        %v329 = vsub.f32 %v216, %v285
        %v330 = vsub.f32 %v217, %v286
        %v331 = vmul.f32 %v327, %v307
        %v332 = vmul.f32 %v328, %v308
        %v333 = vmul.f32 %v329, %v309
        %v334 = vmul.f32 %v330, %v310
        %s335 = scalar_lea.vmem [#allocation4], 64
        %v336 = vld [vmem:[%s335] sm:$0xff]
        %v337 = vld [vmem:[%s335 + $0x8] sm:$0xff]
        %v338 = vld [vmem:[%s335 + $0x10] sm:$0xff]
        %v339 = vld [vmem:[%s335 + $0x18] sm:$0xff]
        %v340 = vld [vmem:[%s335 + $0x20] sm:$0xff]
        %v341 = vld [vmem:[%s335 + $0x28] sm:$0xff]
        %v342 = vld [vmem:[%s335 + $0x30] sm:$0xff]
        %v343 = vld [vmem:[%s335 + $0x38] sm:$0xff]
        %v345 = vsel %vm218, %v331, 0
        %v348 = vsel %vm218, %v332, 0
        %v351 = vsel %vm218, %v333, 0
        %v354 = vsel %vm218, %v334, 0
        %356 = vmatprep.subr.mxu0 0.0
        %357 = vmatpush1.msra.mxu0 %v336
        %358 = vmatprep.subr.mxu0 0.0
        %359 = vmatpush1.msra.mxu0 %v337
        %360 = vmatprep.subr.mxu0 0.0
        %361 = vmatpush1.msra.mxu0 %v338
        %362 = vmatprep.subr.mxu0 0.0
        %363 = vmatpush1.msra.mxu0 %v339
        %364 = vmatprep.subr.mxu0 0.0
        %365 = vmatpush1.msra.mxu0 %v340
        %366 = vmatprep.subr.mxu0 0.0
        %367 = vmatpush1.msra.mxu0 %v341
        %368 = vmatprep.subr.mxu0 0.0
        %369 = vmatpush1.msra.mxu0 %v342
        %370 = vmatprep.subr.mxu0 0.0
        %371 = vmatpush1.msra.mxu0 %v343
        %372 = vmatprep.subr.mxu0 0.0
        %373 = vmatpush1.msra.mxu0 0.0
        %374 = vmatprep.subr.mxu0 0.0
        %375 = vmatpush1.msra.mxu0 0.0
        %376 = vmatprep.subr.mxu0 0.0
        %377 = vmatpush1.msra.mxu0 0.0
        %378 = vmatprep.subr.mxu0 0.0
        %379 = vmatpush1.msra.mxu0 0.0
        %380 = vmatprep.subr.mxu0 0.0
        %381 = vmatpush1.msra.mxu0 0.0
        %382 = vmatprep.subr.mxu0 0.0
        %383 = vmatpush1.msra.mxu0 0.0
        %384 = vmatprep.subr.mxu0 0.0
        %385 = vmatpush1.msra.mxu0 0.0
        %386 = vmatprep.subr.mxu0 0.0
        %387 = vmatpush1.msra.mxu0 0.0
        %388 = vmatprep.subr.mxu0 0.0
        %389 = vmatpush1.msra.mxu0 0.0
        %390 = vmatprep.subr.mxu0 0.0
        %391 = vmatpush1.msra.mxu0 0.0
        %392 = vmatprep.subr.mxu0 0.0
        %393 = vmatpush1.msra.mxu0 0.0
        %394 = vmatprep.subr.mxu0 0.0
        %395 = vmatpush1.msra.mxu0 0.0
        %396 = vmatprep.subr.mxu0 0.0
        %397 = vmatpush1.msra.mxu0 0.0
        %398 = vmatprep.subr.mxu0 0.0
        %399 = vmatpush1.msra.mxu0 0.0
        %400 = vmatprep.subr.mxu0 0.0
        %401 = vmatpush1.msra.mxu0 0.0
        %402 = vmatprep.subr.mxu0 0.0
        %403 = vmatpush1.msra.mxu0 0.0
        %404 = vmatprep.subr.mxu0 0.0
        %405 = vmatpush1.msra.mxu0 0.0
        %406 = vmatprep.subr.mxu0 0.0
        %407 = vmatpush1.msra.mxu0 0.0
        %408 = vmatprep.subr.mxu0 0.0
        %409 = vmatpush1.msra.mxu0 0.0
        %410 = vmatprep.subr.mxu0 0.0
        %411 = vmatpush1.msra.mxu0 0.0
        %412 = vmatprep.subr.mxu0 0.0
        %413 = vmatpush1.msra.mxu0 0.0
        %414 = vmatprep.subr.mxu0 0.0
        %415 = vmatpush1.msra.mxu0 0.0
        %416 = vmatprep.subr.mxu0 0.0
        %417 = vmatpush1.msra.mxu0 0.0
        %418 = vmatprep.subr.mxu0 0.0
        %419 = vmatpush1.msra.mxu0 0.0
        %420 = vmatprep.mubr.f32.mxu0 0.0
        %421 = vmatmul.mubr.f32.gmra.mrb[0].mxu0 %v345
        %v422 = vpop.f32.mrb[0].mxu0
        %v423 = vadd.f32 0.0, %v422
        %v424 = vpop.f32.mrb[0].mxu0
        %425 = vmatprep.mubr.f32.mxu0 0.0
        %426 = vmatmul.mubr.f32.gmra.mrb[0].mxu0 %v348
        %v427 = vpop.f32.mrb[0].mxu0
        %v428 = vadd.f32 0.0, %v427
        %v429 = vpop.f32.mrb[0].mxu0
        %430 = vmatprep.mubr.f32.mxu0 0.0
        %431 = vmatmul.mubr.f32.gmra.mrb[0].mxu0 %v351
        %v432 = vpop.f32.mrb[0].mxu0
        %v433 = vadd.f32 0.0, %v432
        %v434 = vpop.f32.mrb[0].mxu0
        %435 = vmatprep.mubr.f32.mxu0 0.0
        %436 = vmatmul.mubr.f32.gmra.mrb[0].mxu0 %v354
        %v437 = vpop.f32.mrb[0].mxu0
        %v438 = vadd.f32 0.0, %v437
        %v439 = vpop.f32.mrb[0].mxu0
        %440 = vdwg.mxu0
        %v442 = vsel %vm218, %v315, 0
        %v445 = vsel %vm218, %v316, 0
        %v448 = vsel %vm218, %v317, 0
        %v451 = vsel %vm218, %v318, 0
        %453 = vmatprep.subr.mxu0 0.0
        %454 = vmatpush1.msra.mxu0 %v319
        %455 = vmatprep.subr.mxu0 0.0
        %456 = vmatpush1.msra.mxu0 %v320
        %457 = vmatprep.subr.mxu0 0.0
        %458 = vmatpush1.msra.mxu0 %v321
        %459 = vmatprep.subr.mxu0 0.0
        %460 = vmatpush1.msra.mxu0 %v322
        %461 = vmatprep.subr.mxu0 0.0
        %462 = vmatpush1.msra.mxu0 %v323
        %463 = vmatprep.subr.mxu0 0.0
        %464 = vmatpush1.msra.mxu0 %v324
        %465 = vmatprep.subr.mxu0 0.0
        %466 = vmatpush1.msra.mxu0 %v325
        %467 = vmatprep.subr.mxu0 0.0
        %468 = vmatpush1.msra.mxu0 %v326
        %469 = vmatprep.subr.mxu0 0.0
        %470 = vmatpush1.msra.mxu0 0.0
        %471 = vmatprep.subr.mxu0 0.0
        %472 = vmatpush1.msra.mxu0 0.0
        %473 = vmatprep.subr.mxu0 0.0
        %474 = vmatpush1.msra.mxu0 0.0
        %475 = vmatprep.subr.mxu0 0.0
        %476 = vmatpush1.msra.mxu0 0.0
        %477 = vmatprep.subr.mxu0 0.0
        %478 = vmatpush1.msra.mxu0 0.0
        %479 = vmatprep.subr.mxu0 0.0
        %480 = vmatpush1.msra.mxu0 0.0
        %481 = vmatprep.subr.mxu0 0.0
        %482 = vmatpush1.msra.mxu0 0.0
        %483 = vmatprep.subr.mxu0 0.0
        %484 = vmatpush1.msra.mxu0 0.0
        %485 = vmatprep.subr.mxu0 0.0
        %486 = vmatpush1.msra.mxu0 0.0
        %487 = vmatprep.subr.mxu0 0.0
        %488 = vmatpush1.msra.mxu0 0.0
        %489 = vmatprep.subr.mxu0 0.0
        %490 = vmatpush1.msra.mxu0 0.0
        %491 = vmatprep.subr.mxu0 0.0
        %492 = vmatpush1.msra.mxu0 0.0
        %493 = vmatprep.subr.mxu0 0.0
        %494 = vmatpush1.msra.mxu0 0.0
        %495 = vmatprep.subr.mxu0 0.0
        %496 = vmatpush1.msra.mxu0 0.0
        %497 = vmatprep.subr.mxu0 0.0
        %498 = vmatpush1.msra.mxu0 0.0
        %499 = vmatprep.subr.mxu0 0.0
        %500 = vmatpush1.msra.mxu0 0.0
        %501 = vmatprep.subr.mxu0 0.0
        %502 = vmatpush1.msra.mxu0 0.0
        %503 = vmatprep.subr.mxu0 0.0
        %504 = vmatpush1.msra.mxu0 0.0
        %505 = vmatprep.subr.mxu0 0.0
        %506 = vmatpush1.msra.mxu0 0.0
        %507 = vmatprep.subr.mxu0 0.0
        %508 = vmatpush1.msra.mxu0 0.0
        %509 = vmatprep.subr.mxu0 0.0
        %510 = vmatpush1.msra.mxu0 0.0
        %511 = vmatprep.subr.mxu0 0.0
        %512 = vmatpush1.msra.mxu0 0.0
        %513 = vmatprep.subr.mxu0 0.0
        %514 = vmatpush1.msra.mxu0 0.0
        %515 = vmatprep.subr.mxu0 0.0
        %516 = vmatpush1.msra.mxu0 0.0
        %517 = vmatprep.mubr.f32.mxu0 0.0
        %518 = vmatmul.mubr.f32.gmra.mrb[0].mxu0 %v442
        %v519 = vpop.f32.mrb[0].mxu0
        %v520 = vadd.f32 %v423, %v519
        %v521 = vpop.f32.mrb[0].mxu0
        %522 = vmatprep.mubr.f32.mxu0 0.0
        %523 = vmatmul.mubr.f32.gmra.mrb[0].mxu0 %v445
        %v524 = vpop.f32.mrb[0].mxu0
        %v525 = vadd.f32 %v428, %v524
        %v526 = vpop.f32.mrb[0].mxu0
        %527 = vmatprep.mubr.f32.mxu0 0.0
        %528 = vmatmul.mubr.f32.gmra.mrb[0].mxu0 %v448
        %v529 = vpop.f32.mrb[0].mxu0
        %v530 = vadd.f32 %v433, %v529
        %v531 = vpop.f32.mrb[0].mxu0
        %532 = vmatprep.mubr.f32.mxu0 0.0
        %533 = vmatmul.mubr.f32.gmra.mrb[0].mxu0 %v451
        %v534 = vpop.f32.mrb[0].mxu0
        %v535 = vadd.f32 %v438, %v534
        %v536 = vpop.f32.mrb[0].mxu0
        %537 = vdwg.mxu0
        %v538 = vld [vmem:[%s2] sm:$0x1]
        %v540 = vlaneseq
        %v541 = vshrl.u32 %v540, 7
        %v542 = vsub.s32 0, %v541
        %v543 = vrot.slane %v538, %v542
        %v545 = vadd.f32 %v520, %v543
        %v546 = vadd.f32 %v525, %v543
        %v547 = vadd.f32 %v530, %v543
        %v548 = vadd.f32 %v535, %v543
        %549 = vst.msk [vmem:[%s207] sm:$0xff] %vm218, %v545
        %550 = vst.msk [vmem:[%s207 + $0x8] sm:$0xff] %vm218, %v546
        %551 = vst.msk [vmem:[%s207 + $0x10] sm:$0xff] %vm218, %v547
        %552 = vst.msk [vmem:[%s207 + $0x18] sm:$0xff] %vm218, %v548
        %s553 = smul.u32 4, %s18
        %p554 = scmp.lt.s32.totalorder %s553, 15
        %s555 = scalar_select %p554, %s553, 15
        %s556 = smul.addr %s555, 8
        %s557 = scalar_lea.vmem %s3, %s556
        // Predicated region
        $region41: #{tpu_custom_call.1} parent=31 // pred_check
          %p558 = pneg %p104
        $region42: #{tpu_custom_call.1} parent=31 // pred_check_branch
          %560 = sbr.rel (%p558) target = $region44
        $region43: #{tpu_custom_call.1} parent=31 // pred_region
          %s561 = smul.u32 4, %s18
        $region44: #{tpu_custom_call.1} parent=31 // pred_fallthru
          _
      $region32: #{tpu_custom_call.1} parent=5 // pred_fallthru
        _
      %p562 = scmp.le.s32.totalorder 2, %s13
      // Predicated region
      $region45: #{tpu_custom_call.1} parent=5 // pred_check
        %p563 = pneg %p562
      $region46: #{tpu_custom_call.1} parent=5 // pred_check_branch
        %565 = sbr.rel (%p563) target = $region48
      $region47: #{tpu_custom_call.1} parent=5 // pred_region
        %s566 = ssub.s32 %s13, 2
        // Predicated region
        $region49: #{tpu_custom_call.1} parent=47 // pred_check
          %p567 = pneg %p110
        $region50: #{tpu_custom_call.1} parent=47 // pred_check_branch
          %569 = sbr.rel (%p567) target = $region52
        $region51: #{tpu_custom_call.1} parent=47 // pred_region
          %s570 = smul.u32 4, %s19
          %p571 = scmp.lt.s32.totalorder %s570, 15
          %s572 = scalar_select %p571, %s570, 15
          %s573 = smul.addr %s572, 8
          %s574 = scalar_lea.vmem %s3, %s573
        $region52: #{tpu_custom_call.1} parent=47 // pred_fallthru
          _
      $region48: #{tpu_custom_call.1} parent=5 // pred_fallthru
        _
    $region6: #{tpu_custom_call.1} parent=1 // loop_footer
      %s17 = sadd.s32 1, %s13
    $region7: #{tpu_custom_call.1} parent=1 // loop_footer_branch
      %12 = sbr.rel target = $region3
    $region8: #{tpu_custom_call.1} parent=1 // loop_exit
      _
    %575 = vsyncpa [#allocation3], 1
    %s576 = scalar_lea.sflag [#allocation3], 1
    %577 = vsyncpa %s576, 1
    %578 = vsyncpa [#allocation5], 1

</llo_original>
